<compile_context>
chip_gen: v6e
topology: v6e:2x2x1
jax: 0.10.0
libtpu: 0.0.40
codegen_flags: <defaults>
</compile_context>

<pallas_src>
import math

import jax
import jax.numpy as jnp
from jax.experimental import pallas as pl
from jax.experimental.pallas import tpu as pltpu


def _copy_kernel(x_ref, o_ref):
    # Identity copy of the current (tile_r, lane) tile.
    o_ref[...] = x_ref[...]


_MAX_LANE = 2048                     # largest lane width we try (multiple of 128)
_TARGET_TILE_BYTES = 4 * 1024 * 1024 # ~4 MiB tiles; 4 pipeline buffers ~= 16 MiB
_ROW_ALIGN = 32                      # row-tile multiple: sublane-safe for all dtypes


def _pick_lane(total):
    """Largest multiple of 128 (<= _MAX_LANE) dividing `total`, else None."""
    lane = (_MAX_LANE // 128) * 128
    while lane >= 128:
        if total % lane == 0:
            return lane
        lane -= 128
    return None


def unsafe_view(x, target_shape):
    """aten._unsafe_view.default: metadata-only -> a free row-major reshape."""
    target_shape = tuple(int(s) for s in target_shape)
    return jnp.reshape(x, target_shape)


def unsafe_view_pallas_copy(x, target_shape):
    """Same semantics, but materializes the result via a tiled Pallas copy."""
    target_shape = tuple(int(s) for s in target_shape)
    total = math.prod(x.shape) if x.ndim > 0 else 1
    total_tgt = math.prod(target_shape) if target_shape else 1
    assert total == total_tgt, "view size mismatch"

    if total == 0:
        return jnp.reshape(x, target_shape)  # empty: nothing to copy

    lane = _pick_lane(total)
    if lane is None:
        # No lane-dense (multiple-of-128) factorization: a Pallas copy would
        # need masked partial stores or a whole-array block; the metadata-only
        # reshape is strictly better here.
        return jnp.reshape(x, target_shape)

    rows = total // lane
    itemsize = jnp.dtype(x.dtype).itemsize
    x2d = jnp.reshape(x, (rows, lane))

    if rows < 2 * _ROW_ALIGN:
        # Too small to split with (8,128)-aligned tiles: single full-extent block.
        tile_r = rows
    else:
        # Byte-based (dtype-aware) tile sizing: ~4 MiB per tile, 32-row aligned.
        tile_r = max(
            _ROW_ALIGN,
            (_TARGET_TILE_BYTES // (lane * itemsize)) // _ROW_ALIGN * _ROW_ALIGN,
        )
        # Guarantee >= 2 grid steps so input/output DMAs pipeline and the
        # 2 TensorCores on v7x both get row tiles.
        half = max(_ROW_ALIGN, (rows // 2) // _ROW_ALIGN * _ROW_ALIGN)
        tile_r = min(tile_r, half, rows)

    grid = (pl.cdiv(rows, tile_r),)

    out2d = pl.pallas_call(
        _copy_kernel,
        out_shape=jax.ShapeDtypeStruct((rows, lane), x.dtype),
        grid_spec=pltpu.PrefetchScalarGridSpec(
            num_scalar_prefetch=0,
            grid=grid,
            in_specs=[pl.BlockSpec((tile_r, lane), lambda i: (i, 0))],
            out_specs=pl.BlockSpec((tile_r, lane), lambda i: (i, 0)),
        ),
        compiler_params=pltpu.CompilerParams(
            # Row tiles are independent; lets v7x shard them across its 2 TCs.
            # TODO(synk): pltpu.CORE_PARALLEL would force the cross-TC split,
            # but plain "parallel" is safe on every generation.
            dimension_semantics=("parallel",),
            # 4 MiB tiles * (2 in + 2 out) buffers ~= 16 MiB; raise the scoped
            # VMEM limit so v5e's 16 MiB default doesn't squeeze pipelining.
            vmem_limit_bytes=32 << 20,
        ),
        cost_estimate=pl.CostEstimate(
            flops=0,
            transcendentals=0,
            bytes_accessed=2 * total * itemsize,
        ),
    )(x2d)

    return jnp.reshape(out2d, target_shape)


if __name__ == "__main__":
    key = jax.random.PRNGKey(0)

    # Typical _unsafe_view call: flatten the last two spatial dims.
    x = jax.random.normal(key, (2, 4, 16, 16), dtype=jnp.float32)
    target = (2, 4, 256)
    ref = jnp.reshape(x, target)

    # Fast path: metadata-only (the true aten._unsafe_view semantics).
    out_view = unsafe_view(x, target)

    # Pallas path: run the tiled copy kernel once and block on it.
    out_copy = jax.block_until_ready(unsafe_view_pallas_copy(x, target))

    assert out_view.shape == target and out_copy.shape == target
    assert out_copy.dtype == x.dtype
    assert bool(jnp.all(out_view == ref))
    assert bool(jnp.all(out_copy == ref))

    # Slightly larger case to exercise the multi-step, double-buffered grid
    # (rows=128, lane=2048 -> 2 row tiles of 64).
    x2 = jax.random.normal(jax.random.PRNGKey(1), (4, 8, 64, 128), dtype=jnp.float32)
    target2 = (32, 64, 128)
    out2 = jax.block_until_ready(unsafe_view_pallas_copy(x2, target2))
    assert bool(jnp.all(out2 == jnp.reshape(x2, target2)))

    print("KERNEL_OK")
</pallas_src>

<mosaic_0001>
module attributes {stable_mosaic.version = 11 : i64} {
  func.func @_copy_kernel(%arg0: i32, %arg1: memref<1x2048xf32, #tpu.memory_space<vmem>>, %arg2: memref<1x2048xf32, #tpu.memory_space<vmem>>) attributes {dimension_semantics = [#tpu.dimension_semantics<parallel>], iteration_bounds = array<i64: 1>, scalar_prefetch = 0 : i64, scratch_operands = 0 : i64, tpu.core_type = #tpu.core_type<tc>, window_params = [{transform_indices = @transform_0, window_bounds = array<i64: 1, 2048>}, {transform_indices = @transform_1, window_bounds = array<i64: 1, 2048>}]} {
    %c0 = arith.constant 0 : index
    %c0_0 = arith.constant 0 : index
    %0 = vector.load %arg1[%c0, %c0_0] : memref<1x2048xf32, #tpu.memory_space<vmem>>, vector<1x2048xf32>
    %c0_1 = arith.constant 0 : index
    %c0_2 = arith.constant 0 : index
    %1 = vector.load %arg2[%c0_1, %c0_2] : memref<1x2048xf32, #tpu.memory_space<vmem>>, vector<1x2048xf32>
    tpu.vector_store %arg2[%c0_1, %c0_2], %0 {strides = array<i32>} : memref<1x2048xf32, #tpu.memory_space<vmem>>, vector<1x2048xf32>,
    return
  }
  func.func @transform_0(%arg0: i32) -> (i32, i32) {
    %c0_i32 = arith.constant 0 : i32
    %c0_i32_0 = arith.constant 0 : i32
    return %arg0, %c0_i32 : i32, i32
  }
  func.func @transform_1(%arg0: i32) -> (i32, i32) {
    %c0_i32 = arith.constant 0 : i32
    %c0_i32_0 = arith.constant 0 : i32
    return %arg0, %c0_i32 : i32, i32
  }
}

</mosaic_0001>

<llo_original>
// kernel: tpu_custom_call.1
$region0: #{tpu_custom_call.1}
  #allocation0 [shape = 'u32[]', space=smem, size = 0x4, offset = 0x4, fixed_abs, tag = 'smem constant byte address 0x4 - core index']
  #allocation1 [shape = 'u32[144,128]{1,0:T(1,128)}', space=vmem, size = 0x12000, scoped, tag = 'internal scratch']
  %s0 = inlined_call_operand.hbm [shape: f32[1,2048], index: 0, kind: input, shape index: {}]
  %s1 = inlined_call_operand.hbm [shape: f32[1,2048], index: 1, kind: output, shape index: {}]
  %s2 = sld [smem:[#allocation0]]
  $region18: #{tpu_custom_call.1} parent=0
    _
  %s4 = ssub.s32 1, %s2
  %s5 = scalar_select 0, %s4, %s2
  $region1: #{tpu_custom_call.1} parent=0
    #allocation2 [shape = 'u8[8192]{0}', space=vmem, size = 0x2000, scoped, tag = 'input window, operand 0, single buffered']
    #allocation3 [shape = 's32[1]{0}', space=sflag, size = 0x4, scoped, tag = 'scoped memory for tpu_custom_call.1']
    #allocation4 [shape = 's32[1]{0}', space=sflag, size = 0x4, scoped, tag = 'scoped memory for tpu_custom_call.1']
    #allocation5 [shape = 'u8[8192]{0}', space=vmem, size = 0x2000, scoped, tag = 'output window, operand 0, single buffered']
    %6 = vsyncpa [#allocation3], 0
    %7 = vsyncpa [#allocation4], 0
    // Predicated region
    $region2: #{tpu_custom_call.1} parent=1 // pred_check
      _
    $region3: #{tpu_custom_call.1} parent=1 // pred_check_branch
      %9 = sbr.rel (0) target = $region5
    $region4: #{tpu_custom_call.1} parent=1 // pred_region
      %s11 = ssub.s32 256, 256
      %12 = vsyncadd [#allocation3], %s11
      %s14 = sshll.u32 [#allocation2], 4
      %s15 = int_to_ptr.vmem [resolvable:$true] %s14
      %17 = dma.hbm_to_vmem [thread:$0]  %s0, 256, %s15, [#allocation3]
    $region5: #{tpu_custom_call.1} parent=1 // pred_fallthru
      _
    // Predicated region
    $region6: #{tpu_custom_call.1} parent=1 // pred_check
      _
    $region7: #{tpu_custom_call.1} parent=1 // pred_check_branch
      %19 = sbr.rel (0) target = $region9
    $region8: #{tpu_custom_call.1} parent=1 // pred_region
      %20 = dma.done [#allocation3], 256
    $region9: #{tpu_custom_call.1} parent=1 // pred_fallthru
      _
    %v21 = vld [vmem:[#allocation2] sm:$0xff]
    %v22 = vld [vmem:[#allocation2 + $0x8] sm:$0xff]
    %23 = vst [vmem:[#allocation5] sm:$0xff] %v21
    %24 = vst [vmem:[#allocation5 + $0x8] sm:$0xff] %v22
    // Predicated region
    $region10: #{tpu_custom_call.1} parent=1 // pred_check
      _
    $region11: #{tpu_custom_call.1} parent=1 // pred_check_branch
      %26 = sbr.rel (0) target = $region13
    $region12: #{tpu_custom_call.1} parent=1 // pred_region
      %s28 = ssub.s32 256, 256
      %29 = vsyncadd [#allocation4], %s28
      %s31 = sshll.u32 [#allocation5], 4
      %s32 = int_to_ptr.vmem [resolvable:$true] %s31
      %34 = dma.vmem_to_hbm [thread:$0]  %s32, 256, %s1, [#allocation4]
    $region13: #{tpu_custom_call.1} parent=1 // pred_fallthru
      _
    // Predicated region
    $region14: #{tpu_custom_call.1} parent=1 // pred_check
      _
    $region15: #{tpu_custom_call.1} parent=1 // pred_check_branch
      %36 = sbr.rel (0) target = $region17
    $region16: #{tpu_custom_call.1} parent=1 // pred_region
      %37 = dma.done [#allocation4], 256
    $region17: #{tpu_custom_call.1} parent=1 // pred_fallthru
      _
    %38 = vsyncpa [#allocation3], 1
    %39 = vsyncpa [#allocation4], 1

</llo_original>
